<compile_context>
chip_gen: v7x
topology: tpu7x:2x2x1
jax: 0.10.0
libtpu: 0.0.40
codegen_flags: <defaults>
</compile_context>

<pallas_src>
import functools

import jax
import jax.numpy as jnp
from jax.experimental import pallas as pl
from jax.experimental.pallas import tpu as pltpu


def _round_up(x: int, m: int) -> int:
    return -(-x // m) * m


def _pick_block_rows(n: int, cap: int) -> int:
    """Multiple-of-8 row block; keep >= 2 grid steps when n allows (v7x megacore /
    pipelining both want a non-trivial grid)."""
    cap = max(8, (int(cap) // 8) * 8)
    half = _round_up(max(-(-n // 2), 1), 8)
    return max(8, min(cap, half))


# ---------------------------------------------------------------------------
# Dense-streaming path (small / medium C, or C not a multiple of 128).
# ---------------------------------------------------------------------------
def _dsoftmax_dense_kernel(y_ref, cos_ref, out_ref, *,
                           s, cos_median, block_rows, n_rows):
    i = pl.program_id(0)

    tile = cos_ref[...].astype(jnp.float32)          # (block_rows, C); f32 (v5e-safe)
    y = y_ref[...]                                   # (block_rows, 1) int32

    # One-hot select of the target class per row (VPU compare + XLU lane reduce).
    lane_ids = jax.lax.broadcasted_iota(jnp.int32, tile.shape, 1)
    true_cos = jnp.sum(jnp.where(lane_ids == y, tile, 0.0),
                       axis=1, keepdims=True)        # (block_rows, 1)

    # Numerically safe softplus, only N EUP ops per block (selection done first).
    z = s * (cos_median - true_cos)
    sp = jnp.maximum(z, 0.0) + jnp.log1p(jnp.exp(-jnp.abs(z)))

    # Mask rows beyond the real batch (tail block reads unspecified data).
    row_ids = i * block_rows + jax.lax.broadcasted_iota(jnp.int32, (block_rows, 1), 0)
    sp = jnp.where(row_ids < n_rows, sp, 0.0)

    # Per-block partial sum, broadcast across a full 128-lane tile -> one
    # unmasked, lane-dense store per grid step.
    out_ref[...] = jnp.zeros(out_ref.shape, out_ref.dtype) + jnp.sum(sp)


# ---------------------------------------------------------------------------
# Gather path (large C, C % 128 == 0): manual strip DMAs, double-buffered
# across grid steps.
# ---------------------------------------------------------------------------
def _dsoftmax_gather_kernel(y_smem, y_ref, cos_hbm, out_ref, buf, sems, *,
                            s, cos_median, block_rows, lane_tile, n_rows):
    i = pl.program_id(0)
    nsteps = pl.num_programs(0)
    slot = i % 2

    def start_block(block_idx, dst_slot):
        # block_rows independent (1, lane_tile) strip DMAs; rolled loop keeps the
        # scalar slot off the critical path (vs a 256-way static unroll).
        @pl.loop(0, block_rows)
        def _(r):
            row = jnp.minimum(block_idx * block_rows + r, n_rows - 1)   # clamp tail
            cls = y_smem[row]                          # scalar read from SMEM
            col_blk = cls // lane_tile                 # which 128-lane column tile
            idx = dst_slot * block_rows + r
            pltpu.make_async_copy(
                cos_hbm.at[pl.ds(row, 1), col_blk],    # (1, lane_tile) HBM strip
                buf.at[pl.ds(idx, 1)],                 # (1, lane_tile) VMEM row
                sems.at[idx],
            ).start()

    def wait_block(dst_slot):
        @pl.loop(0, block_rows)
        def _(r):
            idx = dst_slot * block_rows + r
            pltpu.make_async_copy(                     # reconstruct: sem + size only
                cos_hbm.at[pl.ds(0, 1), 0],
                buf.at[pl.ds(idx, 1)],
                sems.at[idx],
            ).wait()

    # Prologue: the very first step starts its own gather.
    @pl.when(i == 0)
    def _():
        start_block(0, 0)

    # Prefetch the NEXT block into the other slot before waiting on this one
    # (cross-step double buffering; this is why the grid axis is "arbitrary").
    @pl.when(i + 1 < nsteps)
    def _():
        start_block(i + 1, 1 - slot)

    wait_block(slot)

    row0 = pl.multiple_of(slot * block_rows, 8)
    tile = buf[pl.ds(row0, block_rows), :].astype(jnp.float32)   # in-kernel upcast

    y = y_ref[...]                                     # (block_rows, 1) int32
    lane = y & (lane_tile - 1)                         # target lane within the strip
    lane_ids = jax.lax.broadcasted_iota(jnp.int32, (block_rows, lane_tile), 1)
    true_cos = jnp.sum(jnp.where(lane_ids == lane, tile, 0.0),
                       axis=1, keepdims=True)

    z = s * (cos_median - true_cos)
    sp = jnp.maximum(z, 0.0) + jnp.log1p(jnp.exp(-jnp.abs(z)))
    row_ids = i * block_rows + jax.lax.broadcasted_iota(jnp.int32, (block_rows, 1), 0)
    sp = jnp.where(row_ids < n_rows, sp, 0.0)
    out_ref[...] = jnp.zeros(out_ref.shape, out_ref.dtype) + jnp.sum(sp)


# ---------------------------------------------------------------------------
# Wrapper / dispatch.
# ---------------------------------------------------------------------------
def dsoftmax_intra(cosine: jax.Array, y_true: jax.Array, *,
                   threshold: float = 0.9, s: float = 16.0,
                   dense_max_classes: int = 4096, lane_tile: int = 128,
                   gather_block_rows: int = 256,
                   dense_block_bytes: int = 2 << 20) -> jax.Array:
    """cosine: (N, C) float, y_true: (N,) int -> scalar float32 loss."""
    n, c = cosine.shape
    assert lane_tile & (lane_tile - 1) == 0, "lane_tile must be a power of two"
    y = y_true.reshape(-1).astype(jnp.int32)
    y2d = y.reshape(n, 1)
    itemsize = int(jnp.dtype(cosine.dtype).itemsize)

    # Gather only pays off for large class counts, and needs a 128-aligned C so
    # the (N, C) -> (N, C/128, 128) reshape is a free view (no jnp.pad, i.e. no
    # hidden O(N*C) HBM copy).  Everything else streams densely (sequential DMA
    # near HBM bandwidth, auto double-buffered by BlockSpec).
    use_dense = (c <= dense_max_classes) or (c % lane_tile != 0)

    if use_dense:
        cap = max(8, min(2048, dense_block_bytes // max(c * itemsize, 1)))
        block_rows = _pick_block_rows(n, cap)
        num_blocks = _round_up(n, block_rows) // block_rows
        kernel = functools.partial(
            _dsoftmax_dense_kernel, s=float(s), cos_median=float(threshold),
            block_rows=block_rows, n_rows=n)
        out = pl.pallas_call(
            kernel,
            out_shape=jax.ShapeDtypeStruct((num_blocks, 1, 128), jnp.float32),
            grid_spec=pltpu.PrefetchScalarGridSpec(
                num_scalar_prefetch=0,
                grid=(num_blocks,),
                in_specs=[
                    pl.BlockSpec((block_rows, 1), lambda i: (i, 0)),   # y (VMEM)
                    pl.BlockSpec((block_rows, c), lambda i: (i, 0)),   # cosine tile
                ],
                out_specs=pl.BlockSpec((1, 1, 128), lambda i: (i, 0, 0)),
            ),
            compiler_params=pltpu.CompilerParams(
                dimension_semantics=("parallel",)),      # megacore-shardable rows
            cost_estimate=pl.CostEstimate(
                flops=int(2 * n * c + 8 * n),
                transcendentals=int(2 * n),
                bytes_accessed=int(n * c * itemsize + n * 4 + num_blocks * 512)),
        )(y2d, cosine)
    else:
        block_rows = _pick_block_rows(n, gather_block_rows)
        num_blocks = _round_up(n, block_rows) // block_rows
        cos3 = cosine.reshape(n, c // lane_tile, lane_tile)   # free view, no copy
        kernel = functools.partial(
            _dsoftmax_gather_kernel, s=float(s), cos_median=float(threshold),
            block_rows=block_rows, lane_tile=lane_tile, n_rows=n)
        out = pl.pallas_call(
            kernel,
            out_shape=jax.ShapeDtypeStruct((num_blocks, 1, 128), jnp.float32),
            grid_spec=pltpu.PrefetchScalarGridSpec(
                num_scalar_prefetch=1,                    # y_true -> SMEM
                grid=(num_blocks,),
                in_specs=[
                    pl.BlockSpec((block_rows, 1), lambda i, ys: (i, 0)),  # y (VMEM)
                    pl.BlockSpec(memory_space=pl.ANY),                    # cosine HBM
                ],
                out_specs=pl.BlockSpec((1, 1, 128), lambda i, ys: (i, 0, 0)),
                scratch_shapes=[
                    pltpu.VMEM((2 * block_rows, lane_tile), cosine.dtype),  # 2 slots
                    pltpu.SemaphoreType.DMA((2 * block_rows,)),
                ],
            ),
            # Cross-step prefetch through scratch -> steps are not independent,
            # so this axis must be "arbitrary" (megacore split would break the
            # hand-rolled pipeline).
            compiler_params=pltpu.CompilerParams(
                dimension_semantics=("arbitrary",)),
            cost_estimate=pl.CostEstimate(
                flops=int(2 * n * lane_tile + 8 * n),
                transcendentals=int(2 * n),
                bytes_accessed=int(n * (lane_tile * itemsize + 4) + num_blocks * 512)),
        )(y, y2d, cos3)

    # Finish the mean with a tiny JAX reduce over the per-block partial sums.
    return jnp.sum(out[:, 0, 0]) / jnp.float32(n)


def _reference(cosine, y_true, threshold=0.9, s=16.0):
    true_cos = jnp.take_along_axis(
        cosine, y_true.reshape(-1, 1).astype(jnp.int32), axis=1)
    return jnp.mean(jnp.log(jnp.exp(s * (threshold - true_cos)) + 1.0))


if __name__ == "__main__":
    key = jax.random.PRNGKey(0)

    def run_case(case_key, n, c, **kw):
        k1, k2 = jax.random.split(case_key)
        # "already sphere normalized logits" -> cosine values in [-1, 1]
        cosine = jax.random.uniform(k1, (n, c), jnp.float32, minval=-1.0, maxval=1.0)
        y_true = jax.random.randint(k2, (n,), 0, c, dtype=jnp.int32)
        loss = dsoftmax_intra(cosine, y_true, **kw)
        jax.block_until_ready(loss)
        ref = _reference(cosine, y_true)
        assert jnp.allclose(loss, ref, rtol=1e-5, atol=1e-5), (n, c, loss, ref)

    keys = jax.random.split(key, 3)
    run_case(keys[0], 16, 512)                         # dense path, 2 grid steps
    run_case(keys[1], 13, 300)                         # dense path, ragged rows/classes
    run_case(keys[2], 24, 1024, dense_max_classes=0)   # force gather path (2 steps,
                                                       # double-buffered strip DMAs)
    print("KERNEL_OK")
</pallas_src>

<mosaic_0001>
module attributes {stable_mosaic.version = 11 : i64} {
  func.func @_dsoftmax_dense_kernel(%arg0: i32, %arg1: memref<8x1xi32, #tpu.memory_space<vmem>>, %arg2: memref<8x512xf32, #tpu.memory_space<vmem>>, %arg3: memref<1x1x128xf32, #tpu.memory_space<vmem>>) attributes {dimension_semantics = [#tpu.dimension_semantics<parallel>], iteration_bounds = array<i64: 2>, scalar_prefetch = 0 : i64, scratch_operands = 0 : i64, tpu.core_type = #tpu.core_type<tc>, window_params = [{transform_indices = @transform_0, window_bounds = array<i64: 8, 1>}, {transform_indices = @transform_1, window_bounds = array<i64: 8, 512>}, {transform_indices = @transform_2, window_bounds = array<i64: 1, 1, 128>}]} {
    %c0 = arith.constant 0 : index
    %c0_0 = arith.constant 0 : index
    %0 = vector.load %arg2[%c0, %c0_0] : memref<8x512xf32, #tpu.memory_space<vmem>>, vector<8x512xf32>
    %c0_1 = arith.constant 0 : index
    %c0_2 = arith.constant 0 : index
    %1 = vector.load %arg1[%c0_1, %c0_2] : memref<8x1xi32, #tpu.memory_space<vmem>>, vector<8x1xi32>
    %2 = tpu.iota {dimensions = array<i32: 1>} : vector<8x512xi32>
    %3 = vector.broadcast %1 : vector<8x1xi32> to vector<8x512xi32>
    %4 = arith.cmpi eq, %2, %3 : vector<8x512xi32>
    %cst = arith.constant 0.000000e+00 : f32
    %5 = vector.broadcast %cst : f32 to vector<8x512xf32>
    %6 = arith.select %4, %0, %5 : vector<8x512xi1>, vector<8x512xf32>
    %cst_3 = arith.constant dense<0.000000e+00> : vector<8xf32>
    %7 = vector.multi_reduction <add>, %6, %cst_3 [1] : vector<8x512xf32> to vector<8xf32>
    %8 = vector.shape_cast %7 : vector<8xf32> to vector<8x1xf32>
    %cst_4 = arith.constant 0.899999976 : f32
    %9 = vector.broadcast %cst_4 : f32 to vector<8x1xf32>
    %10 = arith.subf %9, %8 : vector<8x1xf32>
    %cst_5 = arith.constant 1.600000e+01 : f32
    %11 = vector.broadcast %cst_5 : f32 to vector<8x1xf32>
    %12 = arith.mulf %11, %10 : vector<8x1xf32>
    %cst_6 = arith.constant 0.000000e+00 : f32
    %13 = vector.broadcast %cst_6 : f32 to vector<8x1xf32>
    %14 = arith.maximumf %12, %13 : vector<8x1xf32>
    %15 = math.absf %12 : vector<8x1xf32>
    %cst_7 = arith.constant 0.000000e+00 : f32
    %16 = vector.broadcast %cst_7 : f32 to vector<8x1xf32>
    %17 = arith.subf %16, %15 : vector<8x1xf32>
    %18 = math.exp %17 : vector<8x1xf32>
    %19 = math.log1p %18 : vector<8x1xf32>
    %20 = arith.addf %14, %19 : vector<8x1xf32>
    %c8_i32 = arith.constant 8 : i32
    %21 = arith.muli %arg0, %c8_i32 : i32
    %22 = tpu.iota {dimensions = array<i32: 0>} : vector<8x1xi32>
    %23 = vector.broadcast %21 : i32 to vector<8x1xi32>
    %24 = arith.addi %23, %22 : vector<8x1xi32>
    %c16_i32 = arith.constant 16 : i32
    %25 = vector.broadcast %c16_i32 : i32 to vector<8x1xi32>
    %26 = arith.cmpi slt, %24, %25 : vector<8x1xi32>
    %cst_8 = arith.constant 0.000000e+00 : f32
    %27 = vector.broadcast %cst_8 : f32 to vector<8x1xf32>
    %28 = arith.select %26, %20, %27 : vector<8x1xi1>, vector<8x1xf32>
    %cst_9 = arith.constant 0.000000e+00 : f32
    %29 = vector.broadcast %cst_9 : f32 to vector<1x1x128xf32>
    %30 = vector.shape_cast %28 : vector<8x1xf32> to vector<1x8x1xf32>
    %cst_10 = arith.constant dense<0.000000e+00> : vector<1xf32>
    %31 = vector.multi_reduction <add>, %30, %cst_10 [1, 2] : vector<1x8x1xf32> to vector<1xf32>
    %32 = vector.shape_cast %31 : vector<1xf32> to vector<1x1x1xf32>
    %33 = vector.extract %32[0, 0, 0] : f32 from vector<1x1x1xf32>
    %34 = vector.broadcast %33 : f32 to vector<1x1x128xf32>
    %35 = arith.addf %29, %34 : vector<1x1x128xf32>
    %c0_11 = arith.constant 0 : index
    %c0_12 = arith.constant 0 : index
    %c0_13 = arith.constant 0 : index
    %36 = vector.load %arg3[%c0_11, %c0_12, %c0_13] : memref<1x1x128xf32, #tpu.memory_space<vmem>>, vector<1x1x128xf32>
    tpu.vector_store %arg3[%c0_11, %c0_12, %c0_13], %35 {strides = array<i32>} : memref<1x1x128xf32, #tpu.memory_space<vmem>>, vector<1x1x128xf32>,
    return
  }
  func.func @transform_0(%arg0: i32) -> (i32, i32) {
    %c0_i32 = arith.constant 0 : i32
    %c0_i32_0 = arith.constant 0 : i32
    return %arg0, %c0_i32 : i32, i32
  }
  func.func @transform_1(%arg0: i32) -> (i32, i32) {
    %c0_i32 = arith.constant 0 : i32
    %c0_i32_0 = arith.constant 0 : i32
    return %arg0, %c0_i32 : i32, i32
  }
  func.func @transform_2(%arg0: i32) -> (i32, i32, i32) {
    %c0_i32 = arith.constant 0 : i32
    %c0_i32_0 = arith.constant 0 : i32
    %c0_i32_1 = arith.constant 0 : i32
    return %arg0, %c0_i32, %c0_i32_0 : i32, i32, i32
  }
}

</mosaic_0001>

<llo_original>
// kernel: tpu_custom_call.1
$region0: #{tpu_custom_call.1}
  #allocation0 [shape = 'u32[]', space=smem, size = 0x4, offset = 0x4, fixed_abs, tag = 'smem constant byte address 0x4 - core index']
  #allocation1 [shape = 'u32[144,128]{1,0:T(1,128)}', space=vmem, size = 0x12000, scoped, tag = 'internal scratch']
  %s0 = inlined_call_operand.vmem [shape: s32[16,1], index: 0, kind: input, shape index: {}]
  %s1 = inlined_call_operand.hbm [shape: f32[16,512], index: 1, kind: input, shape index: {}]
  %s2 = inlined_call_operand.hbm [shape: f32[2,1,128], index: 2, kind: output, shape index: {}]
  %s3 = sld [smem:[#allocation0]]
  $region45: #{tpu_custom_call.1} parent=0
    _
  %s5 = ssub.s32 1, %s3
  %s6 = scalar_select 0, %s5, %s3
  $region1: #{tpu_custom_call.1} parent=0
    #allocation2 [shape = 'u8[32768]{0}', space=vmem, size = 0x8000, scoped, tag = 'input window, operand 1']
    #allocation3 [shape = 's32[2]{0}', space=sflag, size = 0x8, scoped, tag = 'scoped memory for tpu_custom_call.1']
    #allocation4 [shape = 's32[2]{0}', space=sflag, size = 0x8, scoped, tag = 'scoped memory for tpu_custom_call.1']
    #allocation5 [shape = 'u8[1024]{0}', space=vmem, size = 0x400, scoped, tag = 'output window, operand 0']
    %7 = vsyncpa [#allocation3], 0
    %s8 = scalar_lea.sflag [#allocation3], 1
    %9 = vsyncpa %s8, 0
    %10 = vsyncpa [#allocation4], 0
    %s11 = scalar_lea.sflag [#allocation4], 1
    %12 = vsyncpa %s11, 0
    loop: start=0, step=1, limit=4
    $region2: #{tpu_custom_call.1} parent=1 // loop_pre_header
      _
    $region3: #{tpu_custom_call.1} parent=1 // loop_header
      %s14 = sphi 0, %s18
      %p15 = scmp.ge.s32.totalorder %s14, 4
      %s24 = sphi 0, %s26
      %s27 = sphi 0, %s24
      %s28 = sphi 0, %s27
      %s44 = sphi 0, %s28
      %s50 = sphi 0, %s52
      %s53 = sphi 0, %s50
      %s54 = sphi 0, %s53
      %s70 = sphi 0, %s54
      %s76 = sphi 0, %s78
      %s79 = sphi 0, %s76
      %s80 = sphi 0, %s79
      %s96 = sphi 0, %s80
    $region4: #{tpu_custom_call.1} parent=1 // loop_header_branch
      %17 = sbr.rel (%p15) target = $region8
    $region5: #{tpu_custom_call.1} parent=1 // loop_body
      %s19 = ssub.s32 %s14, 1
      %s20 = ssub.s32 %s14, 2
      %s21 = sadd.s32 %s14, 1
      %s22 = ssub.s32 %s14, %s21
      %p23 = scmp.eq.s32.totalorder %s22, 0
      %s25 = sadd.s32 %s24, 1
      %s26 = scalar_select %p23, %s24, %s25
      %p29 = pneg %p23
      %p30 = scmp.eq.s32.totalorder %s14, 1
      %p31 = por %p29, %p30
      %p32 = scmp.ne.s32.totalorder %s24, %s27
      %p33 = scmp.eq.s32.totalorder %s14, 0
      %p34 = por %p32, %p33
      %p35 = scmp.ne.s32.totalorder %s24, %s27
      %p36 = scmp.eq.s32.totalorder %s19, 1
      %p37 = por %p35, %p36
      %p38 = scmp.ne.s32.totalorder %s27, %s28
      %p39 = scmp.eq.s32.totalorder %s19, 0
      %p40 = por %p38, %p39
      %p41 = scmp.ne.s32.totalorder %s27, %s28
      %p42 = scmp.eq.s32.totalorder %s20, 1
      %p43 = por %p41, %p42
      %p45 = scmp.ne.s32.totalorder %s28, %s44
      %p46 = scmp.eq.s32.totalorder %s20, 0
      %p47 = por %p45, %p46
      %s48 = ssub.s32 %s14, %s21
      %p49 = scmp.eq.s32.totalorder %s48, 0
      %s51 = sadd.s32 %s50, 1
      %s52 = scalar_select %p49, %s50, %s51
      %p55 = pneg %p49
      %p56 = scmp.eq.s32.totalorder %s14, 1
      %p57 = por %p55, %p56
      %p58 = scmp.ne.s32.totalorder %s50, %s53
      %p59 = scmp.eq.s32.totalorder %s14, 0
      %p60 = por %p58, %p59
      %p61 = scmp.ne.s32.totalorder %s50, %s53
      %p62 = scmp.eq.s32.totalorder %s19, 1
      %p63 = por %p61, %p62
      %p64 = scmp.ne.s32.totalorder %s53, %s54
      %p65 = scmp.eq.s32.totalorder %s19, 0
      %p66 = por %p64, %p65
      %p67 = scmp.ne.s32.totalorder %s53, %s54
      %p68 = scmp.eq.s32.totalorder %s20, 1
      %p69 = por %p67, %p68
      %p71 = scmp.ne.s32.totalorder %s54, %s70
      %p72 = scmp.eq.s32.totalorder %s20, 0
      %p73 = por %p71, %p72
      %s74 = ssub.s32 %s14, %s21
      %p75 = scmp.eq.s32.totalorder %s74, 0
      %s77 = sadd.s32 %s76, 1
      %s78 = scalar_select %p75, %s76, %s77
      %p81 = pneg %p75
      %p82 = scmp.eq.s32.totalorder %s14, 1
      %p83 = por %p81, %p82
      %p84 = scmp.ne.s32.totalorder %s76, %s79
      %p85 = scmp.eq.s32.totalorder %s14, 0
      %p86 = por %p84, %p85
      %p87 = scmp.ne.s32.totalorder %s76, %s79
      %p88 = scmp.eq.s32.totalorder %s19, 1
      %p89 = por %p87, %p88
      %p90 = scmp.ne.s32.totalorder %s79, %s80
      %p91 = scmp.eq.s32.totalorder %s19, 0
      %p92 = por %p90, %p91
      %p93 = scmp.ne.s32.totalorder %s79, %s80
      %p94 = scmp.eq.s32.totalorder %s20, 1
      %p95 = por %p93, %p94
      %p97 = scmp.ne.s32.totalorder %s80, %s96
      %p98 = scmp.eq.s32.totalorder %s20, 0
      %p99 = por %p97, %p98
      %p100 = scmp.le.s32.totalorder 1, %s14
      %p101 = scmp.lt.s32.totalorder %s14, 3
      %p102 = pnand %p100, %p101
      %p103 = pneg %p102
      // Predicated region
      $region9: #{tpu_custom_call.1} parent=5 // pred_check
        _
      $region10: #{tpu_custom_call.1} parent=5 // pred_check_branch
        %105 = sbr.rel (%p102) target = $region12
      $region11: #{tpu_custom_call.1} parent=5 // pred_region
        %s106 = ssub.s32 %s14, 1
      $region12: #{tpu_custom_call.1} parent=5 // pred_fallthru
        _
      %p107 = scmp.lt.s32.totalorder %s14, 2
      // Predicated region
      $region13: #{tpu_custom_call.1} parent=5 // pred_check
        %p108 = pneg %p107
      $region14: #{tpu_custom_call.1} parent=5 // pred_check_branch
        %110 = sbr.rel (%p108) target = $region16
      $region15: #{tpu_custom_call.1} parent=5 // pred_region
        // Predicated region
        $region17: #{tpu_custom_call.1} parent=15 // pred_check
          %p111 = pneg %p34
        $region18: #{tpu_custom_call.1} parent=15 // pred_check_branch
          %113 = sbr.rel (%p111) target = $region20
        $region19: #{tpu_custom_call.1} parent=15 // pred_region
          %p114 = scmp.lt.s32.totalorder %s14, 1
          %s115 = scalar_select %p114, %s14, 1
          %s116 = smul.addr %s115, 8
          %s117 = scalar_lea.vmem %s0, %s116
        $region20: #{tpu_custom_call.1} parent=15 // pred_fallthru
          _
        // Predicated region
        $region21: #{tpu_custom_call.1} parent=15 // pred_check
          %p118 = pneg %p60
        $region22: #{tpu_custom_call.1} parent=15 // pred_check_branch
          %120 = sbr.rel (%p118) target = $region24
        $region23: #{tpu_custom_call.1} parent=15 // pred_region
          %s121 = sand.u32 %s50, 1
          %s122 = scalar_lea.sflag [#allocation3], %s121
          %s123 = sand.u32 %s50, 1
          %s124 = smul.addr %s123, 32
          %s125 = scalar_lea.vmem [#allocation2], %s124
          %s127 = ssub.s32 512, 512
          %128 = vsyncadd %s122, %s127
          %s129 = smul.addr %s14, 4
          %s130 = smul.addr %s129, 128
          %s131 = scalar_lea.hbm %s1, %s130
          %s133 = sshll.u32 %s125, 4
          %s134 = int_to_ptr.vmem [resolvable:$true] %s133
          %136 = dma.hbm_to_vmem [thread:$0]  %s131, 512, %s134, %s122
        $region24: #{tpu_custom_call.1} parent=15 // pred_fallthru
          _
      $region16: #{tpu_custom_call.1} parent=5 // pred_fallthru
        _
      %p137 = scmp.le.s32.totalorder 1, %s14
      %p138 = scmp.lt.s32.totalorder %s14, 3
      %p139 = pnand %p137, %p138
      %p140 = pneg %p139
      // Predicated region
      $region25: #{tpu_custom_call.1} parent=5 // pred_check
        _
      $region26: #{tpu_custom_call.1} parent=5 // pred_check_branch
        %142 = sbr.rel (%p139) target = $region28
      $region27: #{tpu_custom_call.1} parent=5 // pred_region
        %s143 = ssub.s32 %s14, 1
        %s144 = sand.u32 %s53, 1
        %s145 = scalar_lea.sflag [#allocation3], %s144
        %s146 = sand.u32 %s53, 1
        %s147 = smul.addr %s146, 32
        %s148 = scalar_lea.vmem [#allocation2], %s147
        // Predicated region
        $region29: #{tpu_custom_call.1} parent=27 // pred_check
          %p149 = pneg %p66
        $region30: #{tpu_custom_call.1} parent=27 // pred_check_branch
          %151 = sbr.rel (%p149) target = $region32
        $region31: #{tpu_custom_call.1} parent=27 // pred_region
          %152 = dma.done %s145, 512
        $region32: #{tpu_custom_call.1} parent=27 // pred_fallthru
          _
        %p153 = scmp.lt.s32.totalorder %s19, 1
        %s154 = scalar_select %p153, %s19, 1
        %s155 = smul.addr %s154, 8
        %s156 = scalar_lea.vmem %s0, %s155
        %p157 = pneg %p40
        %p158 = pneg %p37
        %s159 = sand.u32 %s53, 1
        %s160 = scalar_lea.sflag [#allocation3], %s159
        %s161 = sand.u32 %s53, 1
        %s162 = smul.addr %s161, 32
        %s163 = scalar_lea.vmem [#allocation2], %s162
        %p164 = pneg %p66
        %p165 = pneg %p63
        %p166 = pneg %p92
        %p167 = pneg %p89
        %s168 = sand.u32 %s79, 1
        %s169 = scalar_lea.sflag [#allocation4], %s168
        %s170 = sand.u32 %s79, 1
        %s171 = scalar_lea.vmem [#allocation5], %s170
        %p172 = scmp.lt.s32.totalorder %s19, 1
        %s173 = scalar_select %p172, %s19, 1
        %s174 = smul.addr %s173, 8
        %s175 = scalar_lea.vmem %s0, %s174
        %v176 = vld [vmem:[%s148] sm:$0xff]
        %v177 = vld [vmem:[%s148 + $0x8] sm:$0xff]
        %v178 = vld [vmem:[%s148 + $0x10] sm:$0xff]
        %v179 = vld [vmem:[%s148 + $0x18] sm:$0xff]
        %v180 = vld [vmem:[%s175] sm:$0xff]
        %v181 = vlaneseq
        %v182 = vand.u32 %v181, 127
        %v183 = vadd.s32 %v182, 128
        %v184 = vadd.s32 %v182, 256
        %v185 = vadd.s32 %v182, 384
        %186 = vset.pattern.permute.xlu0 0
        %187 = vperm.xlu0 %186, %v180
        %v188 = vpop.permute.xlu0 %187
        %vm189 = vcmp.eq.s32.totalorder %v182, %v188
        %vm190 = vcmp.eq.s32.totalorder %v183, %v188
        %vm191 = vcmp.eq.s32.totalorder %v184, %v188
        %vm192 = vcmp.eq.s32.totalorder %v185, %v188
        %v193 = vsel %vm189, %v176, 0.0
        %v194 = vsel %vm190, %v177, 0.0
        %v195 = vsel %vm191, %v178, 0.0
        %v196 = vsel %vm192, %v179, 0.0
        %v197 = vadd.f32 %v193, %v194
        %v198 = vadd.f32 %v197, %v195
        %v199 = vadd.f32 %v198, %v196
        %200 = vadd.xlane.f32.xlu0 %v199
        %v201 = vpop.xlane.xlu0 %200
        %v202 = vsub.f32 0.9, %v201
        %v203 = vmul.f32 %v202, 16.0
        %v204 = vmax.f32 %v203, 0.0
        %v205 = vand.u32 2147483647, %v203
        %v206 = vsub.f32 0.0, %v205
        %v207 = vmul.f32 %v206, 1.442695
        %v208 = vpow.pop %v207
        %v209 = vadd.f32 %v208, 1.0
        %v210 = vlog2.pop %v209
        %v211 = vmul.f32 %v210, 0.6931472
        %v212 = vmul.f32 -0.5, %v208
        %v213 = vadd.f32 %v212, 1.0
        %v214 = vmul.f32 %v213, %v208
        %v215 = vand.u32 2147483647, %v208
        %vm216 = vcmp.lt.f32.partialorder %v215, 0.0004427343
        %v217 = vsel %vm216, %v214, %v211
        %v218 = vadd.f32 %v204, %v217
        %s219 = smul.u32 %s19, 8
        %v220 = vlaneseq
        %v221 = vshrl.u32 %v220, 7
        %v222 = vstv %s219
        %v223 = vadd.s32 %v222, %v221
        %vm224 = vcmp.lt.s32.totalorder %v223, 16
        %v225 = vsel %vm224, %v218, 0.0
        %vm226 = vcmask 7168
        %v227 = vsel %vm226, %v225, 0.0
        %228 = vadd.xlane.f32.xlu0 %v227
        %v229 = vpop.xlane.xlu0 %228
        %v230 = vrot.slane %v229, 4
        %v231 = vadd.f32 %v229, %v230
        %v232 = vrot.slane %v231, 2
        %v233 = vadd.f32 %v231, %v232
        %v234 = vrot.slane %v233, 1
        %v235 = vadd.f32 %v233, %v234
        %s236 = vtos %v235
        %v237 = vstv %s236
        %v238 = vadd.f32 %v237, 0.0
        %239 = vst [vmem:[%s171] sm:$0x1] %v238
        %s240 = sand.u32 %s79, 1
        %s241 = scalar_lea.sflag [#allocation4], %s240
        %s242 = sand.u32 %s79, 1
        %s243 = scalar_lea.vmem [#allocation5], %s242
        // Predicated region
        $region33: #{tpu_custom_call.1} parent=27 // pred_check
          %p244 = pneg %p89
        $region34: #{tpu_custom_call.1} parent=27 // pred_check_branch
          %246 = sbr.rel (%p244) target = $region36
        $region35: #{tpu_custom_call.1} parent=27 // pred_region
          %s248 = ssub.s32 16, 16
          %249 = vsyncadd %s241, %s248
          %s250 = smul.addr %s19, 16
          %s251 = scalar_lea.hbm %s2, %s250
          %s253 = sshll.u32 %s243, 4
          %s254 = int_to_ptr.vmem [resolvable:$true] %s253
          %256 = dma.vmem_to_hbm [thread:$0]  %s254, 16, %s251, %s241
        $region36: #{tpu_custom_call.1} parent=27 // pred_fallthru
          _
      $region28: #{tpu_custom_call.1} parent=5 // pred_fallthru
        _
      %p257 = scmp.le.s32.totalorder 2, %s14
      // Predicated region
      $region37: #{tpu_custom_call.1} parent=5 // pred_check
        %p258 = pneg %p257
      $region38: #{tpu_custom_call.1} parent=5 // pred_check_branch
        %260 = sbr.rel (%p258) target = $region40
      $region39: #{tpu_custom_call.1} parent=5 // pred_region
        %s261 = ssub.s32 %s14, 2
        // Predicated region
        $region41: #{tpu_custom_call.1} parent=39 // pred_check
          %p262 = pneg %p95
        $region42: #{tpu_custom_call.1} parent=39 // pred_check_branch
          %264 = sbr.rel (%p262) target = $region44
        $region43: #{tpu_custom_call.1} parent=39 // pred_region
          %s265 = sand.u32 %s80, 1
          %s266 = scalar_lea.sflag [#allocation4], %s265
          %s267 = sand.u32 %s80, 1
          %s268 = scalar_lea.vmem [#allocation5], %s267
          %269 = dma.done %s266, 16
        $region44: #{tpu_custom_call.1} parent=39 // pred_fallthru
          _
      $region40: #{tpu_custom_call.1} parent=5 // pred_fallthru
        _
    $region6: #{tpu_custom_call.1} parent=1 // loop_footer
      %s18 = sadd.s32 1, %s14
    $region7: #{tpu_custom_call.1} parent=1 // loop_footer_branch
      %13 = sbr.rel target = $region3
    $region8: #{tpu_custom_call.1} parent=1 // loop_exit
      _
    %270 = vsyncpa [#allocation3], 1
    %s271 = scalar_lea.sflag [#allocation3], 1
    %272 = vsyncpa %s271, 1
    %273 = vsyncpa [#allocation4], 1
    %s274 = scalar_lea.sflag [#allocation4], 1
    %275 = vsyncpa %s274, 1

</llo_original>
